<compile_context>
chip_gen: v5e
topology: v5e:2x2
jax: 0.10.0
libtpu: 0.0.40
codegen_flags: <defaults>
</compile_context>

<pallas_src>
import functools
import math

import numpy as np
import jax
import jax.numpy as jnp
from jax import lax
from jax.experimental import pallas as pl
from jax.experimental.pallas import tpu as pltpu


def _round_up(a, b):
    return ((a + b - 1) // b) * b


# ----------------------------- parameter setup (deterministic, like __init__)
def _to_mel(hz):
    return 2595 * np.log10(1 + hz / 700)


def _to_hz(mel):
    return 700 * (10 ** (mel / 2595) - 1)


def make_sincconv_params(out_channels, kernel_size, sample_rate=16000,
                         min_low_hz=50, min_band_hz=50):
    """Replicates SincConv_fast.__init__ (deterministic mel-spaced init)."""
    if kernel_size % 2 == 0:
        kernel_size = kernel_size + 1
    low_hz = 30
    high_hz = sample_rate / 2 - (min_low_hz + min_band_hz)
    mel = np.linspace(_to_mel(low_hz), _to_mel(high_hz), out_channels + 1)
    hz = _to_hz(mel)
    low_hz_ = hz[:-1].reshape(-1, 1).astype(np.float32)          # (C, 1)
    band_hz_ = np.diff(hz).reshape(-1, 1).astype(np.float32)     # (C, 1)

    half = kernel_size // 2
    n_lin = np.linspace(0, kernel_size / 2 - 1, int(kernel_size / 2))
    window_ = (0.54 - 0.46 * np.cos(2 * math.pi * n_lin / kernel_size)).astype(np.float32)
    n = (kernel_size - 1) / 2.0
    n_ = (2 * math.pi * np.arange(-n, 0) / sample_rate).astype(np.float32)   # (half,)

    # Mirror to full length K = [left, center(dummy, overwritten), flip(left)].
    n_full = np.concatenate([n_, np.ones((1,), np.float32), n_[::-1]]
                            ).reshape(1, kernel_size)
    w_full = np.concatenate([window_, np.ones((1,), np.float32), window_[::-1]]
                            ).reshape(1, kernel_size)
    assert n_.shape[0] == half and window_.shape[0] == half
    return kernel_size, low_hz_, band_hz_, n_full, w_full


# ----------------------------- Pallas kernels
def _filter_kernel(low_hz_ref, band_hz_ref, n_ref, win_ref, filt_ref, *,
                   half, kernel_size, min_low_hz, min_band_hz, sample_rate):
    low = min_low_hz + jnp.abs(low_hz_ref[...])                              # (C, 1)
    high = jnp.clip(low + min_band_hz + jnp.abs(band_hz_ref[...]),
                    min_low_hz, sample_rate / 2)                             # (C, 1)
    band = high - low                                                        # (C, 1)
    n = n_ref[...]                                                           # (1, K_pad)
    win = win_ref[...]                                                       # (1, K_pad)
    # band-pass (even function of n, so mirrored n reproduces torch.flip)
    bp = (jnp.sin(high * n) - jnp.sin(low * n)) / (n / 2.0) * win            # (C, K_pad)
    bp = bp / (2.0 * band)
    col = jax.lax.broadcasted_iota(jnp.int32, bp.shape, 1)
    bp = jnp.where(col == half, 1.0, bp)          # center tap: 2*band/(2*band) == 1
    bp = jnp.where(col < kernel_size, bp, 0.0)    # zero the K..K_pad-1 padding taps
    filt_ref[...] = bp.astype(filt_ref.dtype)


def _conv1d_kernel(x_ref, f_ref, o_ref, xw_ref, *, kernel_size, k_pad, t_tile):
    # x_ref : (1, 1, 1, frame_len) halo tile of the waveform
    # f_ref : (C, K_pad) f32 filter bank (resident across the whole grid)
    # o_ref : (1, C, T_TILE) output tile (lane-dense, T_TILE % 128 == 0)
    # xw_ref: (K_pad, T_TILE) f32 VMEM scratch -> im2col window matrix
    #
    # Stage the im2col matrix with static lane slices only (no carried
    # accumulator, so unrolling the tap loop costs no vreg pressure).
    for k in range(kernel_size):
        xw_ref[k:k + 1, :] = x_ref[0, 0, :, k:k + t_tile]
    if k_pad > kernel_size:      # zero padding rows so 0-filter-cols x garbage != NaN
        xw_ref[kernel_size:, :] = jnp.zeros((k_pad - kernel_size, t_tile), jnp.float32)

    # Single MXU matmul: bf16 operands, f32 accumulation.
    y = jnp.dot(f_ref[...].astype(jnp.bfloat16),        # (C, K_pad)
                xw_ref[...].astype(jnp.bfloat16),       # (K_pad, T_TILE)
                preferred_element_type=jnp.float32)     # -> (C, T_TILE)
    o_ref[...] = y[None].astype(o_ref.dtype)


# ----------------------------- wrapper
def sinc_conv_fast(waveforms, low_hz_, band_hz_, n_full, window_full, kernel_size,
                   sample_rate=16000, min_low_hz=50, min_band_hz=50,
                   t_tile_max=1024):
    B, in_ch, N = waveforms.shape
    assert in_ch == 1, "SincConv only supports one input channel"
    C = low_hz_.shape[0]
    K = kernel_size
    half = K // 2
    T_out = N - K + 1
    assert T_out > 0

    K_pad = _round_up(K, 8)                               # sublane-aligned taps
    T_tile = min(t_tile_max, _round_up(T_out, 128))       # lane-dense time tile
    T_out_pad = _round_up(T_out, T_tile)
    n_tiles = T_out_pad // T_tile
    frame_len = _round_up(T_tile + K_pad, 128)            # halo tile length
    N_big = (n_tiles - 1) * T_tile + frame_len

    # Pad the mirrored n / window vectors to K_pad (pad value 1.0 — masked
    # out inside the filter kernel, 1.0 just avoids divide-by-zero).
    n_full_p = jnp.pad(jnp.asarray(n_full, jnp.float32),
                       ((0, 0), (0, K_pad - K)), constant_values=1.0)
    w_full_p = jnp.pad(jnp.asarray(window_full, jnp.float32),
                       ((0, 0), (0, K_pad - K)), constant_values=1.0)

    # 1) build the (zero-padded) filter bank (C, K_pad) on-chip, f32.
    filt_pad = pl.pallas_call(
        functools.partial(_filter_kernel, half=half, kernel_size=K,
                          min_low_hz=float(min_low_hz),
                          min_band_hz=float(min_band_hz),
                          sample_rate=float(sample_rate)),
        out_shape=jax.ShapeDtypeStruct((C, K_pad), jnp.float32),
        in_specs=[pl.BlockSpec(memory_space=pltpu.MemorySpace.VMEM)] * 4,
        out_specs=pl.BlockSpec(memory_space=pltpu.MemorySpace.VMEM),
    )(low_hz_, band_hz_, n_full_p, w_full_p)

    # 2) frame the (zero-padded) waveform into overlapping halo tiles so the
    #    conv kernel only ever needs static slices: (B, n_tiles, 1, frame_len).
    x_pad = jnp.pad(waveforms.astype(jnp.float32),
                    ((0, 0), (0, 0), (0, N_big - N)))
    x_tiles = jnp.stack(
        [x_pad[:, 0, j * T_tile:j * T_tile + frame_len] for j in range(n_tiles)],
        axis=1)[:, :, None, :]

    ce = pl.CostEstimate(
        flops=int(2 * B * C * K * T_out_pad),
        transcendentals=0,
        bytes_accessed=int(4 * (B * n_tiles * frame_len + C * K_pad
                                + B * C * T_out_pad)))

    # 3) valid 1D convolution as tiled MXU matmuls, grid over (batch, time tile).
    out_pad = pl.pallas_call(
        functools.partial(_conv1d_kernel, kernel_size=K, k_pad=K_pad, t_tile=T_tile),
        out_shape=jax.ShapeDtypeStruct((B, C, T_out_pad), jnp.float32),
        grid=(B, n_tiles),
        in_specs=[pl.BlockSpec((1, 1, 1, frame_len), lambda b, j: (b, j, 0, 0)),
                  pl.BlockSpec((C, K_pad), lambda b, j: (0, 0))],
        out_specs=pl.BlockSpec((1, C, T_tile), lambda b, j: (b, 0, j)),
        scratch_shapes=[pltpu.VMEM((K_pad, T_tile), jnp.float32)],
        compiler_params=pltpu.CompilerParams(
            dimension_semantics=("parallel", "parallel")),
        cost_estimate=ce,
    )(x_tiles, filt_pad)

    return out_pad[:, :, :T_out], filt_pad[:, :K]


# ----------------------------- plain-JAX references (mirror the torch forward)
def reference_filters(low_hz_, band_hz_, kernel_size, sample_rate=16000,
                      min_low_hz=50, min_band_hz=50):
    K = kernel_size
    n_lin = jnp.linspace(0.0, K / 2 - 1, int(K / 2))
    window_ = 0.54 - 0.46 * jnp.cos(2 * math.pi * n_lin / K)
    n = (K - 1) / 2.0
    n_ = 2 * math.pi * jnp.arange(-n, 0.0).reshape(1, -1) / sample_rate
    low = min_low_hz + jnp.abs(low_hz_)
    high = jnp.clip(low + min_band_hz + jnp.abs(band_hz_),
                    min_low_hz, sample_rate / 2)
    band = (high - low)[:, 0]
    f_low = low * n_            # (C,1)*(1,K//2) broadcast == matmul in the module
    f_high = high * n_
    bpl = (jnp.sin(f_high) - jnp.sin(f_low)) / (n_ / 2) * window_
    bpc = 2 * band.reshape(-1, 1)
    bpr = jnp.flip(bpl, axis=1)
    bp = jnp.concatenate([bpl, bpc, bpr], axis=1) / (2 * band[:, None])
    return bp   # (C, K)


def reference_conv(waveforms, filters):
    C, K = filters.shape
    return lax.conv_general_dilated(
        waveforms, filters.reshape(C, 1, K), window_strides=(1,),
        padding="VALID", dimension_numbers=("NCH", "OIH", "NCH"))


if __name__ == "__main__":
    # small, module-consistent shapes: batch=2, in_channels=1 (required),
    # n_samples=128, out_channels=8, kernel_size=16 (-> 17, made odd).
    B, C, N = 2, 8, 128
    kernel_size_arg = 16
    sample_rate = 16000

    K, low_hz_np, band_hz_np, n_full_np, w_full_np = make_sincconv_params(
        C, kernel_size_arg, sample_rate)

    key = jax.random.PRNGKey(0)
    waveforms = jax.random.normal(key, (B, 1, N), dtype=jnp.float32)

    out, filt = sinc_conv_fast(
        waveforms,
        jnp.asarray(low_hz_np), jnp.asarray(band_hz_np),
        jnp.asarray(n_full_np), jnp.asarray(w_full_np),
        K, sample_rate)
    out, filt = jax.block_until_ready((out, filt))

    # (a) filter bank built on-chip (pure f32 math) vs plain-JAX reference
    ref_filt = reference_filters(jnp.asarray(low_hz_np), jnp.asarray(band_hz_np),
                                 K, sample_rate)
    np.testing.assert_allclose(np.asarray(filt), np.asarray(ref_filt),
                               rtol=1e-3, atol=1e-4)

    # (b) conv output: kernel uses bf16 MXU operands with f32 accumulation, so
    #     compare against a reference conv on bf16-rounded operands.
    x_bf = waveforms.astype(jnp.bfloat16).astype(jnp.float32)
    f_bf = ref_filt.astype(jnp.bfloat16).astype(jnp.float32)
    ref_out = reference_conv(x_bf, f_bf)
    ref_out = jax.block_until_ready(ref_out)

    assert out.shape == (B, C, N - K + 1), out.shape
    np.testing.assert_allclose(np.asarray(out), np.asarray(ref_out),
                               rtol=2e-2, atol=2e-2)
    print("KERNEL_OK")
</pallas_src>

<mosaic_0001>
module attributes {stable_mosaic.version = 11 : i64} {
  func.func @_filter_kernel(%arg0: memref<8x1xf32, #tpu.memory_space<vmem>>, %arg1: memref<8x1xf32, #tpu.memory_space<vmem>>, %arg2: memref<1x24xf32, #tpu.memory_space<vmem>>, %arg3: memref<1x24xf32, #tpu.memory_space<vmem>>, %arg4: memref<8x24xf32, #tpu.memory_space<vmem>>) attributes {dimension_semantics = [], scalar_prefetch = 0 : i64, scratch_operands = 0 : i64, tpu.core_type = #tpu.core_type<tc>} {
    %c0 = arith.constant 0 : index
    %c0_0 = arith.constant 0 : index
    %0 = vector.load %arg0[%c0, %c0_0] : memref<8x1xf32, #tpu.memory_space<vmem>>, vector<8x1xf32>
    %1 = math.absf %0 : vector<8x1xf32>
    %cst = arith.constant 5.000000e+01 : f32
    %2 = vector.broadcast %cst : f32 to vector<8x1xf32>
    %3 = arith.addf %2, %1 : vector<8x1xf32>
    %cst_1 = arith.constant 5.000000e+01 : f32
    %4 = vector.broadcast %cst_1 : f32 to vector<8x1xf32>
    %5 = arith.addf %3, %4 : vector<8x1xf32>
    %c0_2 = arith.constant 0 : index
    %c0_3 = arith.constant 0 : index
    %6 = vector.load %arg1[%c0_2, %c0_3] : memref<8x1xf32, #tpu.memory_space<vmem>>, vector<8x1xf32>
    %7 = math.absf %6 : vector<8x1xf32>
    %8 = arith.addf %5, %7 : vector<8x1xf32>
    %cst_4 = arith.constant 5.000000e+01 : f32
    %cst_5 = arith.constant 8.000000e+03 : f32
    %9 = vector.broadcast %cst_4 : f32 to vector<8x1xf32>
    %10 = arith.maximumf %9, %8 : vector<8x1xf32>
    %11 = vector.broadcast %cst_5 : f32 to vector<8x1xf32>
    %12 = arith.minimumf %11, %10 : vector<8x1xf32>
    %13 = arith.subf %12, %3 : vector<8x1xf32>
    %c0_6 = arith.constant 0 : index
    %c0_7 = arith.constant 0 : index
    %14 = vector.load %arg2[%c0_6, %c0_7] : memref<1x24xf32, #tpu.memory_space<vmem>>, vector<1x24xf32>
    %c0_8 = arith.constant 0 : index
    %c0_9 = arith.constant 0 : index
    %15 = vector.load %arg3[%c0_8, %c0_9] : memref<1x24xf32, #tpu.memory_space<vmem>>, vector<1x24xf32>
    %16 = vector.broadcast %12 : vector<8x1xf32> to vector<8x24xf32>
    %17 = vector.broadcast %14 : vector<1x24xf32> to vector<8x24xf32>
    %18 = arith.mulf %16, %17 : vector<8x24xf32>
    %19 = math.sin %18 : vector<8x24xf32>
    %20 = vector.broadcast %3 : vector<8x1xf32> to vector<8x24xf32>
    %21 = vector.broadcast %14 : vector<1x24xf32> to vector<8x24xf32>
    %22 = arith.mulf %20, %21 : vector<8x24xf32>
    %23 = math.sin %22 : vector<8x24xf32>
    %24 = arith.subf %19, %23 : vector<8x24xf32>
    %cst_10 = arith.constant 2.000000e+00 : f32
    %25 = vector.broadcast %cst_10 : f32 to vector<1x24xf32>
    %26 = arith.divf %14, %25 : vector<1x24xf32>
    %27 = vector.broadcast %26 : vector<1x24xf32> to vector<8x24xf32>
    %28 = arith.divf %24, %27 : vector<8x24xf32>
    %29 = vector.broadcast %15 : vector<1x24xf32> to vector<8x24xf32>
    %30 = arith.mulf %28, %29 : vector<8x24xf32>
    %cst_11 = arith.constant 2.000000e+00 : f32
    %31 = vector.broadcast %cst_11 : f32 to vector<8x1xf32>
    %32 = arith.mulf %31, %13 : vector<8x1xf32>
    %33 = vector.broadcast %32 : vector<8x1xf32> to vector<8x24xf32>
    %34 = arith.divf %30, %33 : vector<8x24xf32>
    %35 = tpu.iota {dimensions = array<i32: 1>} : vector<8x24xi32>
    %c8_i32 = arith.constant 8 : i32
    %36 = vector.broadcast %c8_i32 : i32 to vector<8x24xi32>
    %37 = arith.cmpi eq, %35, %36 : vector<8x24xi32>
    %cst_12 = arith.constant 1.000000e+00 : f32
    %38 = vector.broadcast %cst_12 : f32 to vector<8x24xf32>
    %39 = arith.select %37, %38, %34 : vector<8x24xi1>, vector<8x24xf32>
    %c17_i32 = arith.constant 17 : i32
    %40 = vector.broadcast %c17_i32 : i32 to vector<8x24xi32>
    %41 = arith.cmpi slt, %35, %40 : vector<8x24xi32>
    %cst_13 = arith.constant 0.000000e+00 : f32
    %42 = vector.broadcast %cst_13 : f32 to vector<8x24xf32>
    %43 = arith.select %41, %39, %42 : vector<8x24xi1>, vector<8x24xf32>
    %c0_14 = arith.constant 0 : index
    %c0_15 = arith.constant 0 : index
    %44 = vector.load %arg4[%c0_14, %c0_15] : memref<8x24xf32, #tpu.memory_space<vmem>>, vector<8x24xf32>
    tpu.vector_store %arg4[%c0_14, %c0_15], %43 {strides = array<i32>} : memref<8x24xf32, #tpu.memory_space<vmem>>, vector<8x24xf32>,
    return
  }
}

</mosaic_0001>

<llo_original>
// kernel: tpu_custom_call.1
$region0: #{tpu_custom_call.1}
  #allocation0 [shape = 'u32[]', space=smem, size = 0x4, offset = 0x4, fixed_abs, tag = 'smem constant byte address 0x4 - core index']
  #allocation1 [shape = 'u32[72,128]{1,0:T(1,128)}', space=vmem, size = 0x9000, scoped, tag = 'internal scratch']
  %s0 = inlined_call_operand.vmem [shape: f32[8,1], index: 0, kind: input, shape index: {}]
  %s1 = inlined_call_operand.vmem [shape: f32[8,1], index: 1, kind: input, shape index: {}]
  %s2 = inlined_call_operand.vmem [shape: f32[1,24], index: 2, kind: input, shape index: {}]
  %s3 = inlined_call_operand.vmem [shape: f32[1,24], index: 3, kind: input, shape index: {}]
  %s4 = inlined_call_operand.hbm [shape: f32[8,24], index: 4, kind: output, shape index: {}]
  %s5 = sld [smem:[#allocation0]]
  $region26: #{tpu_custom_call.1} parent=0
    _
  %s7 = ssub.s32 1, %s5
  %s8 = scalar_select 0, %s7, %s5
  $region1: #{tpu_custom_call.1} parent=0
    #allocation2 [shape = 'u8[4096]{0}', space=vmem, size = 0x1000, scoped, tag = 'output window, operand 0, single buffered']
    #allocation3 [shape = 's32[1]{0}', space=sflag, size = 0x4, scoped, tag = 'scoped memory for tpu_custom_call.1']
    %9 = vsyncpa [#allocation3], 0
    // Predicated region
    $region2: #{tpu_custom_call.1} parent=1 // pred_check
      _
    $region3: #{tpu_custom_call.1} parent=1 // pred_check_branch
      %11 = sbr.rel (0) target = $region5
    $region4: #{tpu_custom_call.1} parent=1 // pred_region
      _
    $region5: #{tpu_custom_call.1} parent=1 // pred_fallthru
      _
    // Predicated region
    $region6: #{tpu_custom_call.1} parent=1 // pred_check
      _
    $region7: #{tpu_custom_call.1} parent=1 // pred_check_branch
      %13 = sbr.rel (0) target = $region9
    $region8: #{tpu_custom_call.1} parent=1 // pred_region
      _
    $region9: #{tpu_custom_call.1} parent=1 // pred_fallthru
      _
    // Predicated region
    $region10: #{tpu_custom_call.1} parent=1 // pred_check
      _
    $region11: #{tpu_custom_call.1} parent=1 // pred_check_branch
      %15 = sbr.rel (0) target = $region13
    $region12: #{tpu_custom_call.1} parent=1 // pred_region
      _
    $region13: #{tpu_custom_call.1} parent=1 // pred_fallthru
      _
    // Predicated region
    $region14: #{tpu_custom_call.1} parent=1 // pred_check
      _
    $region15: #{tpu_custom_call.1} parent=1 // pred_check_branch
      %17 = sbr.rel (0) target = $region17
    $region16: #{tpu_custom_call.1} parent=1 // pred_region
      _
    $region17: #{tpu_custom_call.1} parent=1 // pred_fallthru
      _
    %v18 = vld [vmem:[%s0] sm:$0xff]
    %v19 = vand.u32 2147483647, %v18
    %v20 = vadd.f32 %v19, 50.0
    %v21 = vadd.f32 %v20, 50.0
    %v22 = vld [vmem:[%s1] sm:$0xff]
    %v23 = vand.u32 2147483647, %v22
    %v24 = vadd.f32 %v21, %v23
    %v25 = vmax.f32 %v24, 50.0
    %v26 = vmin.f32 %v25, 8000.0
    %v27 = vsub.f32 %v26, %v20
    %v28 = vld [vmem:[%s2] sm:$0x1]
    %v29 = vld [vmem:[%s3] sm:$0x1]
    %31 = vset.pattern.permute.xlu0 0
    %32 = vperm.xlu0 %31, %v26
    %v33 = vpop.permute.xlu0 %32
    %v36 = vperm.slane %v28, 0
    %v38 = vmul.f32 %v33, %v36
    %v39 = vand.u32 2147483647, %v38
    %vm40 = vcmp.le.f32.partialorder %v39, 0.7853982
    %vm41 = vcmp.lt.s32.totalorder %v38, 0
    %v42 = vand.u32 %v38, 2139095040
    %v43 = vshrl.u32 %v42, 23
    %v44 = vsub.s32 %v43, 127
    %v45 = vand.u32 2147483647, %v38
    %v46 = vand.u32 %v45, 8388607
    %v47 = vor.u32 %v46, 8388608
    %v48 = vsub.s32 0, %v47
    %v49 = vadd.s32 %v44, 1
    %vm50 = vcmp.gt.s32.totalorder %v49, 0
    %v51 = vsel %vm50, %v49, 0
    %v52 = vshrl.u32 %v51, 5
    %v53 = vand.u32 %v51, 31
    %v54 = vsub.s32 32, %v53
    %v55 = vshrl.u32 683565275, %v54
    %v56 = vshll.u32 683565275, %v53
    %v57 = vshrl.u32 2475754826, %v54
    %v58 = vor.u32 %v56, %v57
    %v59 = vshll.u32 2475754826, %v53
    %v60 = vshrl.u32 2131351028, %v54
    %v61 = vor.u32 %v59, %v60
    %v62 = vshll.u32 2131351028, %v53
    %v63 = vshrl.u32 2102212464, %v54
    %v64 = vor.u32 %v62, %v63
    %v65 = vshll.u32 2102212464, %v53
    %v66 = vshrl.u32 920167782, %v54
    %v67 = vor.u32 %v65, %v66
    %v68 = vshll.u32 920167782, %v53
    %v69 = vshrl.u32 1326507024, %v54
    %v70 = vor.u32 %v68, %v69
    %vm71 = vcmp.lt.s32.totalorder %v52, 1
    %vm72 = vcmp.lt.s32.totalorder %v52, 2
    %vm73 = vcmp.lt.s32.totalorder %v52, 3
    %vm74 = vcmp.lt.s32.totalorder %v52, 4
    %v75 = vsel %vm71, %v55, %v58
    %v76 = vsel %vm74, %v64, 2102212464
    %v77 = vsel %vm73, %v61, %v76
    %v78 = vsel %vm72, %v75, %v77
    %v79 = vsel %vm71, %v58, %v61
    %v80 = vsel %vm74, %v67, 920167782
    %v81 = vsel %vm73, %v64, %v80
    %v82 = vsel %vm72, %v79, %v81
    %v83 = vsel %vm71, %v61, %v64
    %v84 = vsel %vm74, %v70, 1326507024
    %v85 = vsel %vm73, %v67, %v84
    %v86 = vsel %vm72, %v83, %v85
    %v87 = vshll.u32 %v47, 8
    %v88 = vand.u32 %v87, 65535
    %v89 = vshrl.u32 %v87, 16
    %v90 = vand.u32 %v86, 65535
    %v91 = vshrl.u32 %v86, 16
    %v92 = vmul.u32 %v88, %v90
    %v93 = vmul.u32 %v88, %v91
    %v94 = vmul.u32 %v89, %v90
    %v95 = vmul.u32 %v89, %v91
    %v96 = vshll.u32 %v93, 16
    %v97 = vshrl.u32 %v93, 16
    %v98 = vshll.u32 %v94, 16
    %v99 = vshrl.u32 %v94, 16
    %vm100 = vc.u32 %v92, %v96
    %v101 = vsel %vm100, 1, 0
    %v102 = vadd.s32 %v92, %v96
    %v103 = vadd.s32 %v95, %v101
    %vm104 = vc.u32 %v102, %v98
    %v105 = vsel %vm104, 1, 0
    %v106 = vadd.s32 %v102, %v98
    %v107 = vadd.s32 %v103, %v105
    %v108 = vadd.s32 %v107, %v97
    %v109 = vadd.s32 %v108, %v99
    %v110 = vand.u32 %v87, 65535
    %v111 = vshrl.u32 %v87, 16
    %v112 = vand.u32 %v82, 65535
    %v113 = vshrl.u32 %v82, 16
    %v114 = vmul.u32 %v110, %v112
    %v115 = vmul.u32 %v110, %v113
    %v116 = vmul.u32 %v111, %v112
    %v117 = vmul.u32 %v111, %v113
    %v118 = vshll.u32 %v115, 16
    %v119 = vshrl.u32 %v115, 16
    %v120 = vshll.u32 %v116, 16
    %v121 = vshrl.u32 %v116, 16
    %vm122 = vc.u32 %v114, %v118
    %v123 = vsel %vm122, 1, 0
    %v124 = vadd.s32 %v114, %v118
    %v125 = vadd.s32 %v117, %v123
    %vm126 = vc.u32 %v124, %v120
    %v127 = vsel %vm126, 1, 0
    %v128 = vadd.s32 %v124, %v120
    %v129 = vadd.s32 %v125, %v127
    %v130 = vadd.s32 %v129, %v119
    %v131 = vadd.s32 %v130, %v121
    %v132 = vmul.u32 %v87, %v78
    %v133 = vadd.s32 %v109, %v128
    %vm134 = vc.u32 %v109, %v128
    %v135 = vadd.s32 %v131, 1
    %v136 = vsel %vm134, %v135, %v131
    %v137 = vadd.s32 %v132, %v136
    %v138 = vadd.s32 %v137, 536870912
    %v139 = vshrl.u32 %v138, 30
    %v140 = vshll.u32 %v139, 30
    %v141 = vsub.s32 %v137, %v140
    %vm142 = vcmp.lt.s32.totalorder %v141, 0
    %v143 = vsub.s32 0, %v141
    %v144 = vsel %vm142, %v143, %v141
    %v145 = vclz %v144
    %v146 = vsub.s32 %v145, 2
    %vm147 = vcmp.gt.s32.totalorder 0, %v146
    %v148 = vsel %vm147, 0, %v146
    %v149 = vsub.s32 32, %v148
    %v150 = vshll.u32 %v141, %v148
    %v151 = vshrl.u32 %v133, %v149
    %v152 = vor.u32 %v150, %v151
    %v153 = vsub.s32 4294967266, %v148
    %v154 = vadd.s32 %v153, 127
    %v155 = vshll.u32 %v154, 23
    %v156 = vor.u32 4788187, %v155
    %v157 = vand.u32 2147483647, %v156
    %v159 = vcvt.s32.f32 %v152
    %v160 = vmul.f32 %v159, %v157
    %v161 = vxor.u32 %v160, 2147483648
    %v162 = vsel %vm41, %v161, %v160
    %v163 = vsub.s32 4, %v139
    %v164 = vsel %vm41, %v163, %v139
    %v165 = vsel %vm40, %v38, %v162
    %v166 = vsel %vm40, 0, %v164
    %v167 = vmul.f32 %v165, %v165
    %v168 = vmul.f32 %v167, -0.001358992
    %v169 = vadd.f32 %v168, 0.041655596
    %v170 = vmul.f32 %v167, %v169
    %v171 = vadd.f32 %v170, -0.4999988
    %v172 = vmul.f32 %v167, %v171
    %v173 = vadd.f32 1.0, %v172
    %v174 = vmul.f32 %v165, %v165
    %v175 = vmul.f32 %v174, -0.00019511016
    %v176 = vadd.f32 %v175, 0.008332121
    %v177 = vmul.f32 %v174, %v176
    %v178 = vadd.f32 %v177, -0.16666654
    %v179 = vmul.f32 %v174, %v178
    %v180 = vadd.f32 %v179, 1.0
    %v181 = vmul.f32 %v180, %v165
    %vm182 = vweird.f32 %v38
    %v183 = vadd.s32 %v166, 3
    %v184 = vand.u32 %v183, 3
    %vm185 = vcmp.lt.s32.totalorder %v184, 2
    %vm186 = vcmp.eq.s32.totalorder %v184, 0
    %v187 = vxor.u32 %v181, 2147483648
    %v188 = vsel %vm186, %v173, %v187
    %vm189 = vcmp.eq.s32.totalorder %v184, 2
    %v190 = vxor.u32 %v173, 2147483648
    %v191 = vsel %vm189, %v190, %v181
    %v192 = vsel %vm185, %v188, %v191
    %v193 = vsel %vm182, nan, %v192
    %195 = vset.pattern.permute.xlu0 0
    %196 = vperm.xlu0 %195, %v20
    %v197 = vpop.permute.xlu0 %196
    %v199 = vmul.f32 %v197, %v36
    %v200 = vand.u32 2147483647, %v199
    %vm201 = vcmp.le.f32.partialorder %v200, 0.7853982
    %vm202 = vcmp.lt.s32.totalorder %v199, 0
    %v203 = vand.u32 %v199, 2139095040
    %v204 = vshrl.u32 %v203, 23
    %v205 = vsub.s32 %v204, 127
    %v206 = vand.u32 2147483647, %v199
    %v207 = vand.u32 %v206, 8388607
    %v208 = vor.u32 %v207, 8388608
    %v209 = vsub.s32 0, %v208
    %v210 = vadd.s32 %v205, 1
    %vm211 = vcmp.gt.s32.totalorder %v210, 0
    %v212 = vsel %vm211, %v210, 0
    %v213 = vshrl.u32 %v212, 5
    %v214 = vand.u32 %v212, 31
    %v215 = vsub.s32 32, %v214
    %v216 = vshrl.u32 683565275, %v215
    %v217 = vshll.u32 683565275, %v214
    %v218 = vshrl.u32 2475754826, %v215
    %v219 = vor.u32 %v217, %v218
    %v220 = vshll.u32 2475754826, %v214
    %v221 = vshrl.u32 2131351028, %v215
    %v222 = vor.u32 %v220, %v221
    %v223 = vshll.u32 2131351028, %v214
    %v224 = vshrl.u32 2102212464, %v215
    %v225 = vor.u32 %v223, %v224
    %v226 = vshll.u32 2102212464, %v214
    %v227 = vshrl.u32 920167782, %v215
    %v228 = vor.u32 %v226, %v227
    %v229 = vshll.u32 920167782, %v214
    %v230 = vshrl.u32 1326507024, %v215
    %v231 = vor.u32 %v229, %v230
    %vm232 = vcmp.lt.s32.totalorder %v213, 1
    %vm233 = vcmp.lt.s32.totalorder %v213, 2
    %vm234 = vcmp.lt.s32.totalorder %v213, 3
    %vm235 = vcmp.lt.s32.totalorder %v213, 4
    %v236 = vsel %vm232, %v216, %v219
    %v237 = vsel %vm235, %v225, 2102212464
    %v238 = vsel %vm234, %v222, %v237
    %v239 = vsel %vm233, %v236, %v238
    %v240 = vsel %vm232, %v219, %v222
    %v241 = vsel %vm235, %v228, 920167782
    %v242 = vsel %vm234, %v225, %v241
    %v243 = vsel %vm233, %v240, %v242
    %v244 = vsel %vm232, %v222, %v225
    %v245 = vsel %vm235, %v231, 1326507024
    %v246 = vsel %vm234, %v228, %v245
    %v247 = vsel %vm233, %v244, %v246
    %v248 = vshll.u32 %v208, 8
    %v249 = vand.u32 %v248, 65535
    %v250 = vshrl.u32 %v248, 16
    %v251 = vand.u32 %v247, 65535
    %v252 = vshrl.u32 %v247, 16
    %v253 = vmul.u32 %v249, %v251
    %v254 = vmul.u32 %v249, %v252
    %v255 = vmul.u32 %v250, %v251
    %v256 = vmul.u32 %v250, %v252
    %v257 = vshll.u32 %v254, 16
    %v258 = vshrl.u32 %v254, 16
    %v259 = vshll.u32 %v255, 16
    %v260 = vshrl.u32 %v255, 16
    %vm261 = vc.u32 %v253, %v257
    %v262 = vsel %vm261, 1, 0
    %v263 = vadd.s32 %v253, %v257
    %v264 = vadd.s32 %v256, %v262
    %vm265 = vc.u32 %v263, %v259
    %v266 = vsel %vm265, 1, 0
    %v267 = vadd.s32 %v263, %v259
    %v268 = vadd.s32 %v264, %v266
    %v269 = vadd.s32 %v268, %v258
    %v270 = vadd.s32 %v269, %v260
    %v271 = vand.u32 %v248, 65535
    %v272 = vshrl.u32 %v248, 16
    %v273 = vand.u32 %v243, 65535
    %v274 = vshrl.u32 %v243, 16
    %v275 = vmul.u32 %v271, %v273
    %v276 = vmul.u32 %v271, %v274
    %v277 = vmul.u32 %v272, %v273
    %v278 = vmul.u32 %v272, %v274
    %v279 = vshll.u32 %v276, 16
    %v280 = vshrl.u32 %v276, 16
    %v281 = vshll.u32 %v277, 16
    %v282 = vshrl.u32 %v277, 16
    %vm283 = vc.u32 %v275, %v279
    %v284 = vsel %vm283, 1, 0
    %v285 = vadd.s32 %v275, %v279
    %v286 = vadd.s32 %v278, %v284
    %vm287 = vc.u32 %v285, %v281
    %v288 = vsel %vm287, 1, 0
    %v289 = vadd.s32 %v285, %v281
    %v290 = vadd.s32 %v286, %v288
    %v291 = vadd.s32 %v290, %v280
    %v292 = vadd.s32 %v291, %v282
    %v293 = vmul.u32 %v248, %v239
    %v294 = vadd.s32 %v270, %v289
    %vm295 = vc.u32 %v270, %v289
    %v296 = vadd.s32 %v292, 1
    %v297 = vsel %vm295, %v296, %v292
    %v298 = vadd.s32 %v293, %v297
    %v299 = vadd.s32 %v298, 536870912
    %v300 = vshrl.u32 %v299, 30
    %v301 = vshll.u32 %v300, 30
    %v302 = vsub.s32 %v298, %v301
    %vm303 = vcmp.lt.s32.totalorder %v302, 0
    %v304 = vsub.s32 0, %v302
    %v305 = vsel %vm303, %v304, %v302
    %v306 = vclz %v305
    %v307 = vsub.s32 %v306, 2
    %vm308 = vcmp.gt.s32.totalorder 0, %v307
    %v309 = vsel %vm308, 0, %v307
    %v310 = vsub.s32 32, %v309
    %v311 = vshll.u32 %v302, %v309
    %v312 = vshrl.u32 %v294, %v310
    %v313 = vor.u32 %v311, %v312
    %v314 = vsub.s32 4294967266, %v309
    %v315 = vadd.s32 %v314, 127
    %v316 = vshll.u32 %v315, 23
    %v317 = vor.u32 4788187, %v316
    %v318 = vand.u32 2147483647, %v317
    %v320 = vcvt.s32.f32 %v313
    %v321 = vmul.f32 %v320, %v318
    %v322 = vxor.u32 %v321, 2147483648
    %v323 = vsel %vm202, %v322, %v321
    %v324 = vsub.s32 4, %v300
    %v325 = vsel %vm202, %v324, %v300
    %v326 = vsel %vm201, %v199, %v323
    %v327 = vsel %vm201, 0, %v325
    %v328 = vmul.f32 %v326, %v326
    %v329 = vmul.f32 %v328, -0.001358992
    %v330 = vadd.f32 %v329, 0.041655596
    %v331 = vmul.f32 %v328, %v330
    %v332 = vadd.f32 %v331, -0.4999988
    %v333 = vmul.f32 %v328, %v332
    %v334 = vadd.f32 1.0, %v333
    %v335 = vmul.f32 %v326, %v326
    %v336 = vmul.f32 %v335, -0.00019511016
    %v337 = vadd.f32 %v336, 0.008332121
    %v338 = vmul.f32 %v335, %v337
    %v339 = vadd.f32 %v338, -0.16666654
    %v340 = vmul.f32 %v335, %v339
    %v341 = vadd.f32 %v340, 1.0
    %v342 = vmul.f32 %v341, %v326
    %vm343 = vweird.f32 %v199
    %v344 = vadd.s32 %v327, 3
    %v345 = vand.u32 %v344, 3
    %vm346 = vcmp.lt.s32.totalorder %v345, 2
    %vm347 = vcmp.eq.s32.totalorder %v345, 0
    %v348 = vxor.u32 %v342, 2147483648
    %v349 = vsel %vm347, %v334, %v348
    %vm350 = vcmp.eq.s32.totalorder %v345, 2
    %v351 = vxor.u32 %v334, 2147483648
    %v352 = vsel %vm350, %v351, %v342
    %v353 = vsel %vm346, %v349, %v352
    %v354 = vsel %vm343, nan, %v353
    %v355 = vsub.f32 %v193, %v354
    %v356 = vrcp.pop 2.0
    %v357 = vmul.f32 2.0, %v356
    %v358 = vsub.f32 1.0, %v357
    %v359 = vmul.f32 %v356, %v358
    %v360 = vadd.f32 %v356, %v359
    %vm361 = vweird.f32 %v356
    %v362 = vsel %vm361, %v356, %v360
    %v363 = vmul.f32 %v28, %v362
    %v365 = vperm.slane %v363, 0
    %v367 = vrcp.pop %v365
    %v368 = vmul.f32 %v365, %v367
    %v369 = vsub.f32 1.0, %v368
    %v370 = vmul.f32 %v367, %v369
    %v371 = vadd.f32 %v367, %v370
    %vm372 = vweird.f32 %v365
    %vm373 = vweird.f32 %v367
    %vm374 = vmor %vm372, %vm373
    %v375 = vsel %vm374, %v367, %v371
    %v376 = vand.u32 2147483647, %v365
    %vm377 = vcmp.eq.f32.partialorder %v376, 8.507059e+37
    %v378 = vand.u32 %v365, 2147483648
    %v379 = vor.u32 1.1754944e-38, %v378
    %v380 = vsel %vm377, %v379, %v375
    %v381 = vmul.f32 %v355, %v380
    %v383 = vperm.slane %v29, 0
    %v385 = vmul.f32 %v381, %v383
    %v386 = vmul.f32 %v27, 2.0
    %388 = vset.pattern.permute.xlu0 0
    %389 = vperm.xlu0 %388, %v386
    %v390 = vpop.permute.xlu0 %389
    %v392 = vrcp.pop %v390
    %v393 = vmul.f32 %v390, %v392
    %v394 = vsub.f32 1.0, %v393
    %v395 = vmul.f32 %v392, %v394
    %v396 = vadd.f32 %v392, %v395
    %vm397 = vweird.f32 %v390
    %vm398 = vweird.f32 %v392
    %vm399 = vmor %vm397, %vm398
    %v400 = vsel %vm399, %v392, %v396
    %v401 = vand.u32 2147483647, %v390
    %vm402 = vcmp.eq.f32.partialorder %v401, 8.507059e+37
    %v403 = vand.u32 %v390, 2147483648
    %v404 = vor.u32 1.1754944e-38, %v403
    %v405 = vsel %vm402, %v404, %v400
    %v406 = vmul.f32 %v385, %v405
    %v407 = vlaneseq
    %v408 = vand.u32 %v407, 127
    %vm409 = vcmp.eq.s32.totalorder %v408, 8
    %v410 = vsel %vm409, 1.0, %v406
    %vm411 = vcmp.lt.s32.totalorder %v408, 17
    %v412 = vsel %vm411, %v410, 0.0
    %vm413 = vcmask 195584
    %414 = vst.msk [vmem:[#allocation2] sm:$0xff] %vm413, %v412
    // Predicated region
    $region18: #{tpu_custom_call.1} parent=1 // pred_check
      _
    $region19: #{tpu_custom_call.1} parent=1 // pred_check_branch
      %416 = sbr.rel (0) target = $region21
    $region20: #{tpu_custom_call.1} parent=1 // pred_region
      %418 = vsyncadd [#allocation3], 0
      %s420 = sshll.u32 [#allocation2], 4
      %s421 = int_to_ptr.vmem [resolvable:$true] %s420
      %s422 = sshll.u32 %s4, 4
      %s423 = int_to_ptr.hbm [resolvable:$true] %s422
      %425 = dma.vmem_to_hbm [thread:$0]  %s421, 128, %s423, [#allocation3]
    $region21: #{tpu_custom_call.1} parent=1 // pred_fallthru
      _
    // Predicated region
    $region22: #{tpu_custom_call.1} parent=1 // pred_check
      _
    $region23: #{tpu_custom_call.1} parent=1 // pred_check_branch
      %427 = sbr.rel (0) target = $region25
    $region24: #{tpu_custom_call.1} parent=1 // pred_region
      %429 = dma.done [#allocation3], 128
    $region25: #{tpu_custom_call.1} parent=1 // pred_fallthru
      _
    %430 = vsyncpa [#allocation3], 1

</llo_original>
